<compile_context>
chip_gen: v7x
topology: tpu7x:2x2x1
jax: 0.10.0
libtpu: 0.0.40
codegen_flags: <defaults>
</compile_context>

<pallas_src>
import functools

import jax
import jax.numpy as jnp
from jax.experimental import pallas as pl
from jax.experimental.pallas import tpu as pltpu


def _mean_kernel(x_ref, w_ref, b_ref, mean_ref, *, norm_pre_sampling: bool):
    # x_ref:    (TILE, PACK*K)   f32  -- one batch slab tile (pipelined over grid)
    # w_ref:    (PACK*K, PACK*N) bf16 -- block-diagonal packed weight (VMEM-resident)
    # b_ref:    (1, PACK*N)      f32  -- packed bias (VMEM-resident)
    # mean_ref: (TILE, PACK*N)        -- lane-dense (PACK*N == 128) output slab
    #
    # Cast x in VMEM (keeps HBM traffic at 1x of the f32 producer), then do a
    # single-pass bf16 MXU matmul with f32 accumulation.
    x_bf16 = x_ref[...].astype(jnp.bfloat16)
    mean = jnp.dot(x_bf16, w_ref[...], preferred_element_type=jnp.float32)
    mean = mean + b_ref[...]
    if norm_pre_sampling:
        mean = jnp.tanh(mean)
    mean_ref[...] = mean.astype(mean_ref.dtype)


def prepare_params(weight, bias, logstd):
    """One-time (per parameter update) transform of the DiagGaussian params.

    weight: (num_outputs, num_inputs)  -- PyTorch nn.Linear layout
    bias:   (num_outputs,)
    logstd: (num_outputs,)
    """
    num_outputs, num_inputs = weight.shape
    if num_outputs < 128 and 128 % num_outputs == 0:
        pack = 128 // num_outputs          # 16 for num_outputs=8 -> 128-lane output
    else:
        pack = 1                           # fallback: plain (lane-sparse) layout

    wt = weight.T.astype(jnp.float32)      # (K, N)
    if pack > 1:
        # Block-diagonal replication so mean_slab = x_slab @ w_pack directly.
        w_pack = jnp.kron(jnp.eye(pack, dtype=jnp.float32), wt)        # (pack*K, pack*N)
        b_pack = jnp.tile(bias.astype(jnp.float32), pack).reshape(1, pack * num_outputs)
    else:
        w_pack = wt
        b_pack = bias.astype(jnp.float32).reshape(1, num_outputs)

    # std = max(1e-6, exp(logstd)): parameter-only, independent of x.
    std = jnp.maximum(jnp.float32(1e-6), jnp.exp(logstd.astype(jnp.float32)))

    return {
        "w_pack": w_pack.astype(jnp.bfloat16),   # streamed bf16 into the MXU
        "b_pack": b_pack,                         # added after f32 accumulation
        "std": std,
        "num_inputs": num_inputs,
        "num_outputs": num_outputs,
        "pack": pack,
    }


def _round_up(v, m):
    return ((v + m - 1) // m) * m


def diag_gaussian_forward(x, params, *, norm_actions_pre_sampling=False,
                          tile_slab_rows=2048, out_dtype=jnp.bfloat16):
    """Returns (action_mean (B, num_outputs), std (num_outputs,)) — the Normal params."""
    B, K = x.shape
    assert K == params["num_inputs"]
    N = params["num_outputs"]
    pack = params["pack"]

    kp = pack * K                 # packed contraction dim
    np_ = pack * N                # packed output dim (== 128 when packing)

    # Pad only to a multiple of pack (NOT pack*8): no wrapper-side HBM copy of x
    # when B is already pack-aligned.
    Bp = _round_up(B, pack)
    if Bp != B:
        x = jnp.pad(x, ((0, Bp - B), (0, 0)))
    slab_rows = Bp // pack

    # Free row-major metadata reshape (no copy): (Bp, K) -> (slab_rows, pack*K).
    # NOTE: no .astype here — x stays in its HBM dtype; the cast to bf16 happens
    # in VMEM inside the kernel.
    x_slab = x.reshape(slab_rows, kp)

    # Cap the tile so the double-buffered x block stays ~8 MiB (covers large K).
    x_row_bytes = kp * jnp.dtype(x_slab.dtype).itemsize
    vmem_cap_rows = max(16, ((8 << 20) // (2 * x_row_bytes)) // 16 * 16)
    tile_cap = min(_round_up(tile_slab_rows, 16), vmem_cap_rows)

    # Tile choice:
    #  * >= 2 grid steps whenever there is enough work, so the "parallel" batch
    #    axis actually shards across v7x's two TensorCores.
    #  * tile is a multiple of 16 (safe for bf16 output tiling); the tail is the
    #    cdiv grid's partial last block.  Tiny inputs use a full-extent block.
    if slab_rows >= 32:
        half = _round_up(pl.cdiv(slab_rows, 2), 16)
        tile = min(tile_cap, half)
    else:
        tile = slab_rows              # full-extent block satisfies the layout rule
    grid = (pl.cdiv(slab_rows, tile),)

    kernel = functools.partial(_mean_kernel,
                               norm_pre_sampling=norm_actions_pre_sampling)

    out_itemsize = jnp.dtype(out_dtype).itemsize
    flops = 2 * slab_rows * kp * np_
    transcendentals = slab_rows * np_ if norm_actions_pre_sampling else 0
    bytes_accessed = (slab_rows * kp * x_slab.dtype.itemsize     # x read
                      + kp * np_ * 2                             # bf16 weight
                      + np_ * 4                                  # bias
                      + slab_rows * np_ * out_itemsize)          # mean write

    mean_slab = pl.pallas_call(
        kernel,
        out_shape=jax.ShapeDtypeStruct((slab_rows, np_), out_dtype),
        grid=grid,
        in_specs=[
            pl.BlockSpec((tile, kp), lambda i: (i, 0)),   # x slab: pipelined over batch
            pl.BlockSpec((kp, np_), lambda i: (0, 0)),    # packed weight: VMEM-resident
            pl.BlockSpec((1, np_), lambda i: (0, 0)),     # packed bias:   VMEM-resident
        ],
        out_specs=pl.BlockSpec((tile, np_), lambda i: (i, 0)),
        compiler_params=pltpu.CompilerParams(
            dimension_semantics=("parallel",)),           # shards batch over v7x's 2 TCs
        cost_estimate=pl.CostEstimate(
            flops=flops,
            transcendentals=transcendentals,
            bytes_accessed=bytes_accessed),
    )(x_slab, params["w_pack"], params["b_pack"])

    # Free reshape back: (slab_rows, pack*N) -> (Bp, N); drop batch padding.
    # (Padded rows carry unspecified-input tanh results; they are never read.)
    mean = mean_slab.reshape(Bp, N)[:B]
    return mean, params["std"]


def init_normc_weight(key, num_outputs, num_inputs, gain=1.0):
    """Deterministic replica of init_normc_: row-normalized normal(0,1)."""
    w = jax.random.normal(key, (num_outputs, num_inputs), dtype=jnp.float32)
    w = w * (gain / jnp.sqrt(jnp.sum(w * w, axis=1, keepdims=True)))
    return w


if __name__ == "__main__":
    key = jax.random.PRNGKey(0)
    k_x, k_w = jax.random.split(key)

    # Small shapes consistent with the module: hidden=32 inputs, 8-dim action.
    batch, num_inputs, num_outputs = 8, 32, 8
    init_std = 0.5
    norm_actions_pre_sampling = True

    x = jax.random.normal(k_x, (batch, num_inputs), dtype=jnp.float32)

    weight = init_normc_weight(k_w, num_outputs, num_inputs)        # (N_out, N_in)
    bias = jnp.zeros((num_outputs,), dtype=jnp.float32)             # constant_(0)
    logstd = jnp.log(jnp.zeros((num_outputs,), jnp.float32) + init_std)

    # One-time parameter packing (hoisted out of the per-step path).
    params = prepare_params(weight, bias, logstd)

    mean, std = diag_gaussian_forward(
        x, params, norm_actions_pre_sampling=norm_actions_pre_sampling)
    jax.block_until_ready((mean, std))

    # Reference check in plain JAX (matches torch forward semantics).
    ref_mean = x @ weight.T + bias
    if norm_actions_pre_sampling:
        ref_mean = jnp.tanh(ref_mean)
    ref_std = jnp.maximum(1e-6, jnp.exp(logstd))

    # TODO(synk): torch.distributions.Normal itself (sample/log_prob) is not a
    # kernel; we return its parameters (mean, std) exactly as the module defines them.
    assert mean.shape == (batch, num_outputs)
    # bf16 streaming + bf16 output: compare at bf16-appropriate tolerance.
    assert jnp.allclose(mean.astype(jnp.float32), ref_mean, atol=3e-2, rtol=3e-2)
    assert jnp.allclose(std, ref_std, atol=1e-6, rtol=1e-6)

    print("KERNEL_OK")
</pallas_src>

<mosaic_0001>
module attributes {stable_mosaic.version = 11 : i64} {
  func.func @_mean_kernel(%arg0: i32, %arg1: memref<1x512xf32, #tpu.memory_space<vmem>>, %arg2: memref<512x128xbf16, #tpu.memory_space<vmem>>, %arg3: memref<1x128xf32, #tpu.memory_space<vmem>>, %arg4: memref<1x128xbf16, #tpu.memory_space<vmem>>) attributes {dimension_semantics = [#tpu.dimension_semantics<parallel>], iteration_bounds = array<i64: 1>, scalar_prefetch = 0 : i64, scratch_operands = 0 : i64, tpu.core_type = #tpu.core_type<tc>, window_params = [{transform_indices = @transform_0, window_bounds = array<i64: 1, 512>}, {pipeline_mode = #tpu.pipeline_mode<synchronous>, transform_indices = @transform_1, window_bounds = array<i64: 512, 128>}, {pipeline_mode = #tpu.pipeline_mode<synchronous>, transform_indices = @transform_2, window_bounds = array<i64: 1, 128>}, {transform_indices = @transform_3, window_bounds = array<i64: 1, 128>}]} {
    %c0 = arith.constant 0 : index
    %c0_0 = arith.constant 0 : index
    %0 = vector.load %arg1[%c0, %c0_0] : memref<1x512xf32, #tpu.memory_space<vmem>>, vector<1x512xf32>
    %1 = arith.truncf %0 : vector<1x512xf32> to vector<1x512xbf16>
    %c0_1 = arith.constant 0 : index
    %c0_2 = arith.constant 0 : index
    %2 = vector.load %arg2[%c0_1, %c0_2] : memref<512x128xbf16, #tpu.memory_space<vmem>>, vector<512x128xbf16>
    %cst = arith.constant dense<0.000000e+00> : vector<1x128xf32>
    %3 = tpu.matmul %1, %2, %cst {dimension_numbers = #tpu.dot_dimension_numbers<[1], [0], [0], [1], [0, 0, 1, 1], [], []>} : vector<1x512xbf16>, vector<512x128xbf16>, vector<1x128xf32> -> vector<1x128xf32>
    %c0_3 = arith.constant 0 : index
    %c0_4 = arith.constant 0 : index
    %4 = vector.load %arg3[%c0_3, %c0_4] : memref<1x128xf32, #tpu.memory_space<vmem>>, vector<1x128xf32>
    %5 = arith.addf %3, %4 : vector<1x128xf32>
    %6 = math.tanh %5 : vector<1x128xf32>
    %7 = arith.truncf %6 : vector<1x128xf32> to vector<1x128xbf16>
    %c0_5 = arith.constant 0 : index
    %c0_6 = arith.constant 0 : index
    %8 = vector.load %arg4[%c0_5, %c0_6] : memref<1x128xbf16, #tpu.memory_space<vmem>>, vector<1x128xbf16>
    tpu.vector_store %arg4[%c0_5, %c0_6], %7 {strides = array<i32>} : memref<1x128xbf16, #tpu.memory_space<vmem>>, vector<1x128xbf16>,
    return
  }
  func.func @transform_0(%arg0: i32) -> (i32, i32) {
    %c0_i32 = arith.constant 0 : i32
    %c0_i32_0 = arith.constant 0 : i32
    return %arg0, %c0_i32 : i32, i32
  }
  func.func @transform_1(%arg0: i32) -> (i32, i32) {
    %c0_i32 = arith.constant 0 : i32
    %c0_i32_0 = arith.constant 0 : i32
    %c0_i32_1 = arith.constant 0 : i32
    return %c0_i32, %c0_i32_0 : i32, i32
  }
  func.func @transform_2(%arg0: i32) -> (i32, i32) {
    %c0_i32 = arith.constant 0 : i32
    %c0_i32_0 = arith.constant 0 : i32
    %c0_i32_1 = arith.constant 0 : i32
    return %c0_i32, %c0_i32_0 : i32, i32
  }
  func.func @transform_3(%arg0: i32) -> (i32, i32) {
    %c0_i32 = arith.constant 0 : i32
    %c0_i32_0 = arith.constant 0 : i32
    return %arg0, %c0_i32 : i32, i32
  }
}

</mosaic_0001>

<llo_original>
// kernel: tpu_custom_call.1
$region0: #{tpu_custom_call.1}
  #allocation0 [shape = 'u32[]', space=smem, size = 0x4, offset = 0x4, fixed_abs, tag = 'smem constant byte address 0x4 - core index']
  #allocation1 [shape = 'u32[144,128]{1,0:T(1,128)}', space=vmem, size = 0x12000, scoped, tag = 'internal scratch']
  %s0 = inlined_call_operand.hbm [shape: f32[1,512], index: 0, kind: input, shape index: {}]
  %s1 = inlined_call_operand.hbm [shape: bf16[512,128], index: 1, kind: input, shape index: {}]
  %s2 = inlined_call_operand.vmem [shape: f32[1,128], index: 2, kind: input, shape index: {}]
  %s3 = inlined_call_operand.hbm [shape: bf16[1,128], index: 3, kind: output, shape index: {}]
  %s4 = sld [smem:[#allocation0]]
  $region30: #{tpu_custom_call.1} parent=0
    _
  %s6 = ssub.s32 1, %s4
  %s7 = scalar_select 0, %s6, %s4
  $region1: #{tpu_custom_call.1} parent=0
    #allocation2 [shape = 'u8[2048]{0}', space=vmem, size = 0x800, scoped, tag = 'input window, operand 0, single buffered']
    #allocation3 [shape = 's32[1]{0}', space=sflag, size = 0x4, scoped, tag = 'scoped memory for tpu_custom_call.1']
    #allocation4 [shape = 's32[1]{0}', space=sflag, size = 0x4, scoped, tag = 'scoped memory for tpu_custom_call.1']
    #allocation5 [shape = 'u8[131072]{0}', space=vmem, size = 0x20000, scoped, tag = 'input window, operand 1, single buffered']
    #allocation6 [shape = 's32[1]{0}', space=sflag, size = 0x4, scoped, tag = 'scoped memory for tpu_custom_call.1']
    #allocation7 [shape = 'u8[512]{0}', space=vmem, size = 0x400, scoped, tag = 'output window, operand 0, single buffered']
    %8 = vsyncpa [#allocation3], 0
    %9 = vsyncpa [#allocation6], 0
    %10 = vsyncpa [#allocation4], 0
    // Predicated region
    $region2: #{tpu_custom_call.1} parent=1 // pred_check
      _
    $region3: #{tpu_custom_call.1} parent=1 // pred_check_branch
      %12 = sbr.rel (0) target = $region5
    $region4: #{tpu_custom_call.1} parent=1 // pred_region
      %s14 = ssub.s32 64, 64
      %15 = vsyncadd [#allocation3], %s14
      %s17 = sshll.u32 [#allocation2], 4
      %s18 = int_to_ptr.vmem [resolvable:$true] %s17
      %20 = dma.hbm_to_vmem [thread:$0]  %s0, 64, %s18, [#allocation3]
    $region5: #{tpu_custom_call.1} parent=1 // pred_fallthru
      _
    // Predicated region
    $region6: #{tpu_custom_call.1} parent=1 // pred_check
      _
    $region7: #{tpu_custom_call.1} parent=1 // pred_check_branch
      %22 = sbr.rel (0) target = $region9
    $region8: #{tpu_custom_call.1} parent=1 // pred_region
      %s24 = ssub.s32 4096, 4096
      %25 = vsyncadd [#allocation6], %s24
      %s26 = sshll.u32 [#allocation5], 4
      %s27 = int_to_ptr.vmem [resolvable:$true] %s26
      %32 = dma.hbm_to_vmem [thread:$0]  %s1, 4096, %s27, [#allocation6], 64, 64, 4
    $region9: #{tpu_custom_call.1} parent=1 // pred_fallthru
      _
    // Predicated region
    $region10: #{tpu_custom_call.1} parent=1 // pred_check
      _
    $region11: #{tpu_custom_call.1} parent=1 // pred_check_branch
      %34 = sbr.rel (0) target = $region13
    $region12: #{tpu_custom_call.1} parent=1 // pred_region
      _
    $region13: #{tpu_custom_call.1} parent=1 // pred_fallthru
      _
    // Predicated region
    $region14: #{tpu_custom_call.1} parent=1 // pred_check
      _
    $region15: #{tpu_custom_call.1} parent=1 // pred_check_branch
      %36 = sbr.rel (0) target = $region17
    $region16: #{tpu_custom_call.1} parent=1 // pred_region
      %37 = dma.done [#allocation3], 64
    $region17: #{tpu_custom_call.1} parent=1 // pred_fallthru
      _
    // Predicated region
    $region18: #{tpu_custom_call.1} parent=1 // pred_check
      _
    $region19: #{tpu_custom_call.1} parent=1 // pred_check_branch
      %39 = sbr.rel (0) target = $region21
    $region20: #{tpu_custom_call.1} parent=1 // pred_region
      %40 = dma.done [#allocation6], 4096
    $region21: #{tpu_custom_call.1} parent=1 // pred_fallthru
      _
    %v42 = vld [vmem:[#allocation2] sm:$0xf]
    %v44 = vlaneseq
    %v45 = vshrl.u32 %v44, 7
    %v46 = vsub.s32 0, %v45
    %v47 = vrot.slane %v42, %v46
    %v48 = vlaneseq
    %v49 = vshrl.u32 %v48, 7
    %v50 = vsub.s32 1, %v49
    %v51 = vrot.slane %v42, %v50
    %v52 = vlaneseq
    %v53 = vshrl.u32 %v52, 7
    %v54 = vsub.s32 2, %v53
    %v55 = vrot.slane %v42, %v54
    %v56 = vlaneseq
    %v57 = vshrl.u32 %v56, 7
    %v58 = vsub.s32 3, %v57
    %v59 = vrot.slane %v42, %v58
    %v64 = vpack.c.bf16 %v47, %v47
    %v65 = vpack.c.bf16 %v51, %v51
    %v66 = vpack.c.bf16 %v55, %v55
    %v67 = vpack.c.bf16 %v59, %v59
    %v68 = vld [vmem:[#allocation5] sm:$0xf]
    %v69 = vld [vmem:[#allocation5 + $0x4] sm:$0xf]
    %v70 = vld [vmem:[#allocation5 + $0x8] sm:$0xf]
    %v71 = vld [vmem:[#allocation5 + $0xc] sm:$0xf]
    %v72 = vld [vmem:[#allocation5 + $0x10] sm:$0xf]
    %v73 = vld [vmem:[#allocation5 + $0x14] sm:$0xf]
    %v74 = vld [vmem:[#allocation5 + $0x18] sm:$0xf]
    %v75 = vld [vmem:[#allocation5 + $0x1c] sm:$0xf]
    %v76 = vld [vmem:[#allocation5 + $0x20] sm:$0xf]
    %v77 = vld [vmem:[#allocation5 + $0x24] sm:$0xf]
    %v78 = vld [vmem:[#allocation5 + $0x28] sm:$0xf]
    %v79 = vld [vmem:[#allocation5 + $0x2c] sm:$0xf]
    %v80 = vld [vmem:[#allocation5 + $0x30] sm:$0xf]
    %v81 = vld [vmem:[#allocation5 + $0x34] sm:$0xf]
    %v82 = vld [vmem:[#allocation5 + $0x38] sm:$0xf]
    %v83 = vld [vmem:[#allocation5 + $0x3c] sm:$0xf]
    %v84 = vld [vmem:[#allocation5 + $0x40] sm:$0xf]
    %v85 = vld [vmem:[#allocation5 + $0x44] sm:$0xf]
    %v86 = vld [vmem:[#allocation5 + $0x48] sm:$0xf]
    %v87 = vld [vmem:[#allocation5 + $0x4c] sm:$0xf]
    %v88 = vld [vmem:[#allocation5 + $0x50] sm:$0xf]
    %v89 = vld [vmem:[#allocation5 + $0x54] sm:$0xf]
    %v90 = vld [vmem:[#allocation5 + $0x58] sm:$0xf]
    %v91 = vld [vmem:[#allocation5 + $0x5c] sm:$0xf]
    %v92 = vld [vmem:[#allocation5 + $0x60] sm:$0xf]
    %v93 = vld [vmem:[#allocation5 + $0x64] sm:$0xf]
    %v94 = vld [vmem:[#allocation5 + $0x68] sm:$0xf]
    %v95 = vld [vmem:[#allocation5 + $0x6c] sm:$0xf]
    %v96 = vld [vmem:[#allocation5 + $0x70] sm:$0xf]
    %v97 = vld [vmem:[#allocation5 + $0x74] sm:$0xf]
    %v98 = vld [vmem:[#allocation5 + $0x78] sm:$0xf]
    %v99 = vld [vmem:[#allocation5 + $0x7c] sm:$0xf]
    %v100 = vld [vmem:[#allocation5 + $0x80] sm:$0xf]
    %v101 = vld [vmem:[#allocation5 + $0x84] sm:$0xf]
    %v102 = vld [vmem:[#allocation5 + $0x88] sm:$0xf]
    %v103 = vld [vmem:[#allocation5 + $0x8c] sm:$0xf]
    %v104 = vld [vmem:[#allocation5 + $0x90] sm:$0xf]
    %v105 = vld [vmem:[#allocation5 + $0x94] sm:$0xf]
    %v106 = vld [vmem:[#allocation5 + $0x98] sm:$0xf]
    %v107 = vld [vmem:[#allocation5 + $0x9c] sm:$0xf]
    %v108 = vld [vmem:[#allocation5 + $0xa0] sm:$0xf]
    %v109 = vld [vmem:[#allocation5 + $0xa4] sm:$0xf]
    %v110 = vld [vmem:[#allocation5 + $0xa8] sm:$0xf]
    %v111 = vld [vmem:[#allocation5 + $0xac] sm:$0xf]
    %v112 = vld [vmem:[#allocation5 + $0xb0] sm:$0xf]
    %v113 = vld [vmem:[#allocation5 + $0xb4] sm:$0xf]
    %v114 = vld [vmem:[#allocation5 + $0xb8] sm:$0xf]
    %v115 = vld [vmem:[#allocation5 + $0xbc] sm:$0xf]
    %v116 = vld [vmem:[#allocation5 + $0xc0] sm:$0xf]
    %v117 = vld [vmem:[#allocation5 + $0xc4] sm:$0xf]
    %v118 = vld [vmem:[#allocation5 + $0xc8] sm:$0xf]
    %v119 = vld [vmem:[#allocation5 + $0xcc] sm:$0xf]
    %v120 = vld [vmem:[#allocation5 + $0xd0] sm:$0xf]
    %v121 = vld [vmem:[#allocation5 + $0xd4] sm:$0xf]
    %v122 = vld [vmem:[#allocation5 + $0xd8] sm:$0xf]
    %v123 = vld [vmem:[#allocation5 + $0xdc] sm:$0xf]
    %v124 = vld [vmem:[#allocation5 + $0xe0] sm:$0xf]
    %v125 = vld [vmem:[#allocation5 + $0xe4] sm:$0xf]
    %v126 = vld [vmem:[#allocation5 + $0xe8] sm:$0xf]
    %v127 = vld [vmem:[#allocation5 + $0xec] sm:$0xf]
    %v128 = vld [vmem:[#allocation5 + $0xf0] sm:$0xf]
    %v129 = vld [vmem:[#allocation5 + $0xf4] sm:$0xf]
    %v130 = vld [vmem:[#allocation5 + $0xf8] sm:$0xf]
    %v131 = vld [vmem:[#allocation5 + $0xfc] sm:$0xf]
    %v132 = vld [vmem:[%s2] sm:$0x1]
    %v197 = vunpack.c.l.b16 %v68
    %v198 = vunpack.c.l.b16 %v69
    %v199 = vunpack.c.l.b16 %v70
    %v200 = vunpack.c.l.b16 %v71
    %v201 = vunpack.c.l.b16 %v72
    %v202 = vunpack.c.l.b16 %v73
    %v203 = vunpack.c.l.b16 %v74
    %v204 = vunpack.c.l.b16 %v75
    %v205 = vunpack.c.l.b16 %v76
    %v206 = vunpack.c.l.b16 %v77
    %v207 = vunpack.c.l.b16 %v78
    %v208 = vunpack.c.l.b16 %v79
    %v209 = vunpack.c.l.b16 %v80
    %v210 = vunpack.c.l.b16 %v81
    %v211 = vunpack.c.l.b16 %v82
    %v212 = vunpack.c.l.b16 %v83
    %v213 = vunpack.c.l.b16 %v84
    %v214 = vunpack.c.l.b16 %v85
    %v215 = vunpack.c.l.b16 %v86
    %v216 = vunpack.c.l.b16 %v87
    %v217 = vunpack.c.l.b16 %v88
    %v218 = vunpack.c.l.b16 %v89
    %v219 = vunpack.c.l.b16 %v90
    %v220 = vunpack.c.l.b16 %v91
    %v221 = vunpack.c.l.b16 %v92
    %v222 = vunpack.c.l.b16 %v93
    %v223 = vunpack.c.l.b16 %v94
    %v224 = vunpack.c.l.b16 %v95
    %v225 = vunpack.c.l.b16 %v96
    %v226 = vunpack.c.l.b16 %v97
    %v227 = vunpack.c.l.b16 %v98
    %v228 = vunpack.c.l.b16 %v99
    %v229 = vunpack.c.l.b16 %v100
    %v230 = vunpack.c.l.b16 %v101
    %v231 = vunpack.c.l.b16 %v102
    %v232 = vunpack.c.l.b16 %v103
    %v233 = vunpack.c.l.b16 %v104
    %v234 = vunpack.c.l.b16 %v105
    %v235 = vunpack.c.l.b16 %v106
    %v236 = vunpack.c.l.b16 %v107
    %v237 = vunpack.c.l.b16 %v108
    %v238 = vunpack.c.l.b16 %v109
    %v239 = vunpack.c.l.b16 %v110
    %v240 = vunpack.c.l.b16 %v111
    %v241 = vunpack.c.l.b16 %v112
    %v242 = vunpack.c.l.b16 %v113
    %v243 = vunpack.c.l.b16 %v114
    %v244 = vunpack.c.l.b16 %v115
    %v245 = vunpack.c.l.b16 %v116
    %v246 = vunpack.c.l.b16 %v117
    %v247 = vunpack.c.l.b16 %v118
    %v248 = vunpack.c.l.b16 %v119
    %v249 = vunpack.c.l.b16 %v120
    %v250 = vunpack.c.l.b16 %v121
    %v251 = vunpack.c.l.b16 %v122
    %v252 = vunpack.c.l.b16 %v123
    %v253 = vunpack.c.l.b16 %v124
    %v254 = vunpack.c.l.b16 %v125
    %v255 = vunpack.c.l.b16 %v126
    %v256 = vunpack.c.l.b16 %v127
    %v257 = vunpack.c.l.b16 %v128
    %v258 = vunpack.c.l.b16 %v129
    %v259 = vunpack.c.l.b16 %v130
    %v260 = vunpack.c.l.b16 %v131
    %v261 = vpack.c.b16 %v198, %v197
    %v262 = vpack.c.b16 %v200, %v199
    %v263 = vpack.c.b16 %v202, %v201
    %v264 = vpack.c.b16 %v204, %v203
    %v265 = vpack.c.b16 %v206, %v205
    %v266 = vpack.c.b16 %v208, %v207
    %v267 = vpack.c.b16 %v210, %v209
    %v268 = vpack.c.b16 %v212, %v211
    %v269 = vpack.c.b16 %v214, %v213
    %v270 = vpack.c.b16 %v216, %v215
    %v271 = vpack.c.b16 %v218, %v217
    %v272 = vpack.c.b16 %v220, %v219
    %v273 = vpack.c.b16 %v222, %v221
    %v274 = vpack.c.b16 %v224, %v223
    %v275 = vpack.c.b16 %v226, %v225
    %v276 = vpack.c.b16 %v228, %v227
    %v277 = vpack.c.b16 %v230, %v229
    %v278 = vpack.c.b16 %v232, %v231
    %v279 = vpack.c.b16 %v234, %v233
    %v280 = vpack.c.b16 %v236, %v235
    %v281 = vpack.c.b16 %v238, %v237
    %v282 = vpack.c.b16 %v240, %v239
    %v283 = vpack.c.b16 %v242, %v241
    %v284 = vpack.c.b16 %v244, %v243
    %v285 = vpack.c.b16 %v246, %v245
    %v286 = vpack.c.b16 %v248, %v247
    %v287 = vpack.c.b16 %v250, %v249
    %v288 = vpack.c.b16 %v252, %v251
    %v289 = vpack.c.b16 %v254, %v253
    %v290 = vpack.c.b16 %v256, %v255
    %v291 = vpack.c.b16 %v258, %v257
    %v292 = vpack.c.b16 %v260, %v259
    %325 = vmatprep.subr.bf16.mxu0 0
    %326 = vmatpush1.bf16.msra.mxu0 %v261
    %327 = vmatprep.subr.bf16.mxu0 0
    %328 = vmatpush1.bf16.msra.mxu0 %v262
    %329 = vmatprep.subr.bf16.mxu0 0
    %330 = vmatpush1.bf16.msra.mxu0 %v263
    %331 = vmatprep.subr.bf16.mxu0 0
    %332 = vmatpush1.bf16.msra.mxu0 %v264
    %333 = vmatprep.subr.bf16.mxu0 0
    %334 = vmatpush1.bf16.msra.mxu0 %v265
    %335 = vmatprep.subr.bf16.mxu0 0
    %336 = vmatpush1.bf16.msra.mxu0 %v266
    %337 = vmatprep.subr.bf16.mxu0 0
    %338 = vmatpush1.bf16.msra.mxu0 %v267
    %339 = vmatprep.subr.bf16.mxu0 0
    %340 = vmatpush1.bf16.msra.mxu0 %v268
    %341 = vmatprep.subr.bf16.mxu0 0
    %342 = vmatpush1.bf16.msra.mxu0 %v269
    %343 = vmatprep.subr.bf16.mxu0 0
    %344 = vmatpush1.bf16.msra.mxu0 %v270
    %345 = vmatprep.subr.bf16.mxu0 0
    %346 = vmatpush1.bf16.msra.mxu0 %v271
    %347 = vmatprep.subr.bf16.mxu0 0
    %348 = vmatpush1.bf16.msra.mxu0 %v272
    %349 = vmatprep.subr.bf16.mxu0 0
    %350 = vmatpush1.bf16.msra.mxu0 %v273
    %351 = vmatprep.subr.bf16.mxu0 0
    %352 = vmatpush1.bf16.msra.mxu0 %v274
    %353 = vmatprep.subr.bf16.mxu0 0
    %354 = vmatpush1.bf16.msra.mxu0 %v275
    %355 = vmatprep.subr.bf16.mxu0 0
    %356 = vmatpush1.bf16.msra.mxu0 %v276
    %357 = vmatprep.mubr.bf16.mxu0 %v65
    %358 = vmatmul.mubr.bf16.gmra.mrb[0].mxu0 %v64
    %v359 = vpop.f32.mrb[0].mxu0
    %v360 = vadd.f32 %v132, %v359
    %v361 = vpop.f32.mrb[0].mxu0
    %v362 = vpop.f32.mrb[0].mxu0
    %v363 = vpop.f32.mrb[0].mxu0
    %364 = vdwg.mxu0
    %365 = vmatprep.subr.bf16.mxu0 0
    %366 = vmatpush1.bf16.msra.mxu0 %v277
    %367 = vmatprep.subr.bf16.mxu0 0
    %368 = vmatpush1.bf16.msra.mxu0 %v278
    %369 = vmatprep.subr.bf16.mxu0 0
    %370 = vmatpush1.bf16.msra.mxu0 %v279
    %371 = vmatprep.subr.bf16.mxu0 0
    %372 = vmatpush1.bf16.msra.mxu0 %v280
    %373 = vmatprep.subr.bf16.mxu0 0
    %374 = vmatpush1.bf16.msra.mxu0 %v281
    %375 = vmatprep.subr.bf16.mxu0 0
    %376 = vmatpush1.bf16.msra.mxu0 %v282
    %377 = vmatprep.subr.bf16.mxu0 0
    %378 = vmatpush1.bf16.msra.mxu0 %v283
    %379 = vmatprep.subr.bf16.mxu0 0
    %380 = vmatpush1.bf16.msra.mxu0 %v284
    %381 = vmatprep.subr.bf16.mxu0 0
    %382 = vmatpush1.bf16.msra.mxu0 %v285
    %383 = vmatprep.subr.bf16.mxu0 0
    %384 = vmatpush1.bf16.msra.mxu0 %v286
    %385 = vmatprep.subr.bf16.mxu0 0
    %386 = vmatpush1.bf16.msra.mxu0 %v287
    %387 = vmatprep.subr.bf16.mxu0 0
    %388 = vmatpush1.bf16.msra.mxu0 %v288
    %389 = vmatprep.subr.bf16.mxu0 0
    %390 = vmatpush1.bf16.msra.mxu0 %v289
    %391 = vmatprep.subr.bf16.mxu0 0
    %392 = vmatpush1.bf16.msra.mxu0 %v290
    %393 = vmatprep.subr.bf16.mxu0 0
    %394 = vmatpush1.bf16.msra.mxu0 %v291
    %395 = vmatprep.subr.bf16.mxu0 0
    %396 = vmatpush1.bf16.msra.mxu0 %v292
    %397 = vmatprep.mubr.bf16.mxu0 %v67
    %398 = vmatmul.mubr.bf16.gmra.mrb[0].mxu0 %v66
    %v399 = vpop.f32.mrb[0].mxu0
    %v400 = vadd.f32 %v360, %v399
    %v401 = vpop.f32.mrb[0].mxu0
    %v402 = vpop.f32.mrb[0].mxu0
    %v403 = vpop.f32.mrb[0].mxu0
    %404 = vdwg.mxu0
    %v405 = vtanh.pop %v400
    %v406 = vpack.c.bf16 %v405, %v405
    %vm407 = vcmask 1040384
    %vm408 = vsmask.f32 256
    %vm409 = vmand %vm407, %vm408
    %v410 = vld [vmem:[#allocation7] sm:$0x1]
    %v411 = vsel %vm409, %v406, %v410
    %412 = vst [vmem:[#allocation7] sm:$0x1] %v411
    // Predicated region
    $region22: #{tpu_custom_call.1} parent=1 // pred_check
      _
    $region23: #{tpu_custom_call.1} parent=1 // pred_check_branch
      %414 = sbr.rel (0) target = $region25
    $region24: #{tpu_custom_call.1} parent=1 // pred_region
      %s416 = ssub.s32 16, 16
      %417 = vsyncadd [#allocation4], %s416
      %s419 = sshll.u32 [#allocation7], 4
      %s420 = int_to_ptr.vmem [resolvable:$true] %s419
      %422 = dma.vmem_to_hbm [thread:$0]  %s420, 16, %s3, [#allocation4]
    $region25: #{tpu_custom_call.1} parent=1 // pred_fallthru
      _
    // Predicated region
    $region26: #{tpu_custom_call.1} parent=1 // pred_check
      _
    $region27: #{tpu_custom_call.1} parent=1 // pred_check_branch
      %424 = sbr.rel (0) target = $region29
    $region28: #{tpu_custom_call.1} parent=1 // pred_region
      %425 = dma.done [#allocation4], 16
    $region29: #{tpu_custom_call.1} parent=1 // pred_fallthru
      _
    %426 = vsyncpa [#allocation3], 1
    %427 = vsyncpa [#allocation6], 1
    %428 = vsyncpa [#allocation4], 1

</llo_original>
